<compile_context>
chip_gen: v7x
topology: tpu7x:2x2x1
jax: 0.10.0
libtpu: 0.0.40
codegen_flags: <defaults>
</compile_context>

<pallas_src>
import functools

import jax
import jax.numpy as jnp
from jax.experimental import pallas as pl
from jax.experimental.pallas import tpu as pltpu

_LANES = 128      # last dim of blocks should be a multiple of this (lane-dense)
_SUBLANES = 8     # second-to-last block dim should be a multiple of this
_MIB = 1024 * 1024


def _round_up(x, m):
    return ((x + m - 1) // m) * m


# ---------------------------------------------------------------------------
# Per-generation budgets. VMEM capacity is the proxy for the chip generation:
# v7x has 64 MiB VMEM per TensorCore (and ~2x the HBM bandwidth of v6e), while
# v5e / v6e have 128 MiB.
# ---------------------------------------------------------------------------
@functools.lru_cache(maxsize=None)
def _tpu_budgets():
    try:
        cap = int(pltpu.get_tpu_info().vmem_capacity_bytes)
    except Exception:
        cap = 64 * _MIB  # conservative fallback (v7x-sized)
    if cap <= 64 * _MIB:
        # v7x: ~3.2 TB/s HBM -> bigger streamed tiles, but only 64 MiB VMEM.
        return {"vmem_limit": 48 * _MIB, "tile_byte_budget": 8 * _MIB}
    # v5e / v6e: 128 MiB VMEM.
    return {"vmem_limit": 96 * _MIB, "tile_byte_budget": 4 * _MIB}


# ---------------------------------------------------------------------------
# Kernels
# ---------------------------------------------------------------------------
def _node_apply_kernel(h_ref, w_ref, b_ref, o_ref):
    # Single-K-step path (the whole contraction fits one block): no scratch.
    # h_ref: (TILE_N, tile_k)  w_ref: (tile_k, tile_o)  b_ref: (1, tile_o)
    y = jnp.dot(h_ref[...], w_ref[...], preferred_element_type=jnp.float32)
    y = y + b_ref[...].astype(jnp.float32)
    o_ref[...] = jnp.maximum(y, 0.0).astype(o_ref.dtype)


def _node_apply_kernel_acc(h_ref, w_ref, b_ref, o_ref, acc_ref):
    # K-tiled path with an f32 VMEM accumulator (scaling path for large layers).
    k = pl.program_id(2)

    @pl.when(k == 0)
    def _():
        acc_ref[...] = jnp.zeros_like(acc_ref)

    acc_ref[...] += jnp.dot(h_ref[...], w_ref[...],
                            preferred_element_type=jnp.float32)

    @pl.when(k == pl.num_programs(2) - 1)
    def _():
        y = acc_ref[...] + b_ref[...].astype(jnp.float32)
        o_ref[...] = jnp.maximum(y, 0.0).astype(o_ref.dtype)


# ---------------------------------------------------------------------------
# One-time parameter preparation (model init, NOT per call)
# ---------------------------------------------------------------------------
def prepare_linear_params(weight, bias, param_dtype=None):
    """weight: [out_feats, in_feats] (nn.Linear layout); bias: [out_feats].

    Returns (w_t, b2d): weight transposed / zero-padded to [in_feats, out_pad]
    (out_pad = next multiple of 128, so the kernel's output stores are
    lane-dense/unmasked) and bias as f32 [1, out_pad].  Pass
    param_dtype=jnp.bfloat16 to halve streamed weight bytes; accumulation stays
    f32 inside the kernel.
    """
    out_feats, in_feats = weight.shape
    out_pad = _round_up(out_feats, _LANES)
    w_dtype = param_dtype if param_dtype is not None else weight.dtype
    w_t = jnp.zeros((in_feats, out_pad), w_dtype).at[:, :out_feats].set(
        weight.T.astype(w_dtype))
    b2d = jnp.zeros((1, out_pad), jnp.float32).at[:, :out_feats].set(
        bias.astype(jnp.float32))
    return w_t, b2d


# ---------------------------------------------------------------------------
# Tile selection helpers (all trace-time Python)
# ---------------------------------------------------------------------------
def _auto_feature_tiles(in_feats, out_pad, w_itemsize, vmem_limit):
    """Keep the whole weight VMEM-resident (fetched once, single-buffered) when
    it comfortably fits; otherwise tile the out-feature / contraction axes."""
    if in_feats * out_pad * w_itemsize <= vmem_limit // 3:
        return in_feats, out_pad
    def pick(dim):
        for cand in (512, 256, 128):
            if dim % cand == 0 and cand < dim:
                return cand
        return dim
    return pick(in_feats), pick(out_pad)


def _auto_tile_n(n, in_feats, out_pad, h_itemsize, out_itemsize, w_itemsize,
                 tile_k, tile_o, w_buffers, use_acc, byte_budget, vmem_limit):
    """Pick TILE_N so each grid step streams ~byte_budget bytes, then shrink
    until the whole working set (incl. double buffering) fits the VMEM limit."""
    n_ceil = _round_up(max(n, 1), _SUBLANES)
    per_row_bytes = in_feats * h_itemsize + out_pad * out_itemsize
    tile_n = byte_budget // max(per_row_bytes, 1)
    tile_n = max(_SUBLANES, (tile_n // _SUBLANES) * _SUBLANES)
    tile_n = min(tile_n, n_ceil, 8192)

    def vmem_bytes(tn):
        b = 2 * tn * tile_k * h_itemsize               # h (double-buffered)
        b += w_buffers * tile_k * tile_o * w_itemsize  # weight
        b += 2 * tile_o * 4                            # bias (f32)
        b += 2 * tn * tile_o * out_itemsize            # out (double-buffered)
        if use_acc:
            b += tn * tile_o * 4                       # f32 accumulator scratch
        return b

    while tile_n > _SUBLANES and vmem_bytes(tile_n) > (vmem_limit * 3) // 4:
        tile_n = max(_SUBLANES, _round_up(tile_n // 2, _SUBLANES))
    return tile_n


# ---------------------------------------------------------------------------
# Forward pass: activation(Linear(h)) with activation = ReLU
# ---------------------------------------------------------------------------
@functools.partial(
    jax.jit,
    static_argnames=("out_feats", "tile_n", "tile_o", "tile_k", "out_dtype",
                     "keep_padded"))
def node_apply(h, w_t, b2d, *, out_feats, tile_n=None, tile_o=None, tile_k=None,
               out_dtype=None, keep_padded=False):
    """h: [N, in_feats]; w_t: [in_feats, out_pad]; b2d: [1, out_pad] (f32).

    Returns ReLU(h @ W^T + b) as [N, out_feats] (or [N, out_pad] when
    keep_padded=True, which avoids an extra HBM round-trip for unaligned
    out_feats).
    """
    n, in_feats = h.shape
    assert w_t.shape[0] == in_feats and b2d.shape == (1, w_t.shape[1])
    out_pad = w_t.shape[1]
    out_dt = jnp.dtype(out_dtype) if out_dtype is not None else h.dtype

    budgets = _tpu_budgets()
    vmem_limit = budgets["vmem_limit"]
    byte_budget = budgets["tile_byte_budget"]

    # ---- feature-axis tiles (scaling path for big layers) ------------------
    auto_k, auto_o = _auto_feature_tiles(in_feats, out_pad,
                                         w_t.dtype.itemsize, vmem_limit)
    tile_k = auto_k if tile_k is None else tile_k
    tile_o = auto_o if tile_o is None else tile_o
    # Partial / unaligned K tiles would fold OOB garbage into the reduction
    # (input OOB reads are not zero-filled) -> fall back to a single K block.
    if tile_k != in_feats and (tile_k % _LANES != 0 or in_feats % tile_k != 0):
        tile_k = in_feats
    if tile_o != out_pad and (tile_o % _LANES != 0 or out_pad % tile_o != 0):
        tile_o = out_pad
    grid_k = in_feats // tile_k
    grid_o = out_pad // tile_o
    use_acc = grid_k > 1

    # Grid-invariant operands are fetched exactly once -> single-buffer them so
    # their second buffer's VMEM can go to a larger TILE_N instead.
    w_invariant = (grid_k == 1 and grid_o == 1)
    b_invariant = (grid_o == 1)
    w_buffers = 1 if w_invariant else 2

    # ---- node-axis tile from the streamed-bytes budget ---------------------
    if tile_n is None:
        tile_n = _auto_tile_n(n, in_feats, out_pad, h.dtype.itemsize,
                              out_dt.itemsize, w_t.dtype.itemsize,
                              tile_k, tile_o, w_buffers, use_acc,
                              byte_budget, vmem_limit)
    else:
        tile_n = min(_round_up(tile_n, _SUBLANES), _round_up(max(n, 1), _SUBLANES))
    grid_n = pl.cdiv(n, tile_n)
    grid = (grid_n, grid_o, grid_k)

    # ---- BlockSpecs ---------------------------------------------------------
    h_spec = pl.BlockSpec((tile_n, tile_k), lambda i, j, k: (i, k))  # streamed
    if w_invariant:
        w_spec = pl.BlockSpec((tile_k, tile_o), lambda i, j, k: (k, j),
                              pipeline_mode=pl.Buffered(1))          # resident
    else:
        w_spec = pl.BlockSpec((tile_k, tile_o), lambda i, j, k: (k, j))
    if b_invariant:
        b_spec = pl.BlockSpec((1, tile_o), lambda i, j, k: (0, j),
                              pipeline_mode=pl.Buffered(1))          # resident
    else:
        b_spec = pl.BlockSpec((1, tile_o), lambda i, j, k: (0, j))
    out_spec = pl.BlockSpec((tile_n, tile_o), lambda i, j, k: (i, j))

    kernel = _node_apply_kernel_acc if use_acc else _node_apply_kernel
    scratch_shapes = ([pltpu.VMEM((tile_n, tile_o), jnp.float32)]
                      if use_acc else [])

    # Mem-bound kernel: tell XLA the real traffic / flops.
    bytes_accessed = (grid_o * n * in_feats * h.dtype.itemsize
                      + in_feats * out_pad * w_t.dtype.itemsize
                      + out_pad * 4
                      + n * out_pad * out_dt.itemsize)
    cost = pl.CostEstimate(flops=2 * n * in_feats * out_feats,
                           transcendentals=0, bytes_accessed=bytes_accessed)

    out_padded = pl.pallas_call(
        kernel,
        out_shape=jax.ShapeDtypeStruct((n, out_pad), out_dt),
        grid=grid,
        in_specs=[h_spec, w_spec, b_spec],
        out_specs=out_spec,
        scratch_shapes=scratch_shapes,
        compiler_params=pltpu.CompilerParams(
            # Node / out-feature tiles are independent; K is the reduction and
            # stays innermost + "arbitrary".
            # TODO(synk): on v7x, verify via xprof that the node axis splits
            # across both TensorCores; if one TC is idle, switch the first axis
            # to pltpu.CORE_PARALLEL.
            dimension_semantics=("parallel", "parallel", "arbitrary"),
            vmem_limit_bytes=vmem_limit,
        ),
        cost_estimate=cost,
    )(h, w_t, b2d)

    if keep_padded or out_feats == out_pad:
        return out_padded  # lane-dense output, no extra HBM round-trip
    # TODO(synk): for unaligned out_feats prefer keep_padded=True and fold this
    # slice into the consumer's BlockSpec; as a standalone XLA op it re-reads
    # and re-writes the whole [N, out_feats] output in HBM.
    return out_padded[:, :out_feats]


def node_apply_ref(h, weight, bias):
    return jnp.maximum(h @ weight.T + bias, 0.0)


# TODO(synk): the DGL `node.data['h']` dict plumbing of NodeApplyModule has no
# Pallas equivalent; only the Linear + activation (ReLU) math is implemented.

if __name__ == "__main__":
    key = jax.random.PRNGKey(0)

    def make_case(k, n, in_feats, out_feats):
        k_h, k_w, k_b = jax.random.split(k, 3)
        h = jax.random.normal(k_h, (n, in_feats), dtype=jnp.float32)
        bound = 1.0 / (in_feats ** 0.5)  # nn.Linear default init range
        w = jax.random.uniform(k_w, (out_feats, in_feats),
                               minval=-bound, maxval=bound, dtype=jnp.float32)
        b = jax.random.uniform(k_b, (out_feats,),
                               minval=-bound, maxval=bound, dtype=jnp.float32)
        return h, w, b

    keys = jax.random.split(key, 3)

    # Case 1: tiny f32 layer with unaligned out_feats (exercises lane padding
    # plus the fallback slice) — matches the module's small GCN hidden sizes.
    h, w, b = make_case(keys[0], 8, 32, 32)
    w_t, b2d = prepare_linear_params(w, b)
    out = jax.block_until_ready(node_apply(h, w_t, b2d, out_feats=32))
    ref = node_apply_ref(h, w, b)
    assert out.shape == ref.shape
    assert jnp.allclose(out, ref, atol=1e-5, rtol=1e-5)

    # Case 2: bf16-streamed activations + weights, lane-aligned out_feats (no
    # post-kernel slice), forced small node tile -> multi-step pipelined grid
    # with a partial (masked) last tile. f32 accumulation keeps accuracy.
    h, w, b = make_case(keys[1], 1000, 64, 128)
    w_t, b2d = prepare_linear_params(w, b, param_dtype=jnp.bfloat16)
    out = jax.block_until_ready(
        node_apply(h.astype(jnp.bfloat16), w_t, b2d, out_feats=128,
                   tile_n=256, out_dtype=jnp.float32))
    ref = node_apply_ref(h, w, b)
    assert out.shape == ref.shape
    assert jnp.allclose(out, ref, atol=5e-2, rtol=5e-2)

    # Case 3: scaling path — out-feature and K tiling with the f32 VMEM
    # accumulator (grid = node-tiles x out-tiles x k-tiles, pl.when init/store).
    h, w, b = make_case(keys[2], 512, 256, 256)
    w_t, b2d = prepare_linear_params(w, b)
    out = jax.block_until_ready(
        node_apply(h, w_t, b2d, out_feats=256,
                   tile_n=128, tile_o=128, tile_k=128))
    ref = node_apply_ref(h, w, b)
    assert out.shape == ref.shape
    assert jnp.allclose(out, ref, atol=2e-4, rtol=2e-4)

    print("KERNEL_OK")
</pallas_src>

<mosaic_0001>
module attributes {stable_mosaic.version = 11 : i64} {
  func.func @_node_apply_kernel(%arg0: i32, %arg1: i32, %arg2: i32, %arg3: memref<8x32xf32, #tpu.memory_space<vmem>>, %arg4: memref<32x128xf32, #tpu.memory_space<vmem>>, %arg5: memref<1x128xf32, #tpu.memory_space<vmem>>, %arg6: memref<8x128xf32, #tpu.memory_space<vmem>>) attributes {dimension_semantics = [#tpu.dimension_semantics<parallel>, #tpu.dimension_semantics<parallel>, #tpu.dimension_semantics<arbitrary>], iteration_bounds = array<i64: 1, 1, 1>, scalar_prefetch = 0 : i64, scratch_operands = 0 : i64, tpu.core_type = #tpu.core_type<tc>, window_params = [{transform_indices = @transform_0, window_bounds = array<i64: 8, 32>}, {pipeline_mode = #tpu.pipeline_mode<synchronous>, transform_indices = @transform_1, window_bounds = array<i64: 32, 128>}, {pipeline_mode = #tpu.pipeline_mode<synchronous>, transform_indices = @transform_2, window_bounds = array<i64: 1, 128>}, {transform_indices = @transform_3, window_bounds = array<i64: 8, 128>}]} {
    %c0 = arith.constant 0 : index
    %c0_0 = arith.constant 0 : index
    %0 = vector.load %arg3[%c0, %c0_0] : memref<8x32xf32, #tpu.memory_space<vmem>>, vector<8x32xf32>
    %c0_1 = arith.constant 0 : index
    %c0_2 = arith.constant 0 : index
    %1 = vector.load %arg4[%c0_1, %c0_2] : memref<32x128xf32, #tpu.memory_space<vmem>>, vector<32x128xf32>
    %cst = arith.constant dense<0.000000e+00> : vector<8x128xf32>
    %2 = tpu.matmul %0, %1, %cst {dimension_numbers = #tpu.dot_dimension_numbers<[1], [0], [0], [1], [0, 0, 1, 1], [], []>} : vector<8x32xf32>, vector<32x128xf32>, vector<8x128xf32> -> vector<8x128xf32>
    %c0_3 = arith.constant 0 : index
    %c0_4 = arith.constant 0 : index
    %3 = vector.load %arg5[%c0_3, %c0_4] : memref<1x128xf32, #tpu.memory_space<vmem>>, vector<1x128xf32>
    %4 = vector.broadcast %3 : vector<1x128xf32> to vector<8x128xf32>
    %5 = arith.addf %2, %4 : vector<8x128xf32>
    %cst_5 = arith.constant 0.000000e+00 : f32
    %6 = vector.broadcast %cst_5 : f32 to vector<8x128xf32>
    %7 = arith.maximumf %5, %6 : vector<8x128xf32>
    %c0_6 = arith.constant 0 : index
    %c0_7 = arith.constant 0 : index
    %8 = vector.load %arg6[%c0_6, %c0_7] : memref<8x128xf32, #tpu.memory_space<vmem>>, vector<8x128xf32>
    tpu.vector_store %arg6[%c0_6, %c0_7], %7 {strides = array<i32>} : memref<8x128xf32, #tpu.memory_space<vmem>>, vector<8x128xf32>,
    return
  }
  func.func @transform_0(%arg0: i32, %arg1: i32, %arg2: i32) -> (i32, i32) {
    %c0_i32 = arith.constant 0 : i32
    return %arg0, %arg2 : i32, i32
  }
  func.func @transform_1(%arg0: i32, %arg1: i32, %arg2: i32) -> (i32, i32) {
    %c0_i32 = arith.constant 0 : i32
    return %arg2, %arg1 : i32, i32
  }
  func.func @transform_2(%arg0: i32, %arg1: i32, %arg2: i32) -> (i32, i32) {
    %c0_i32 = arith.constant 0 : i32
    %c0_i32_0 = arith.constant 0 : i32
    return %c0_i32, %arg1 : i32, i32
  }
  func.func @transform_3(%arg0: i32, %arg1: i32, %arg2: i32) -> (i32, i32) {
    %c0_i32 = arith.constant 0 : i32
    return %arg0, %arg1 : i32, i32
  }
}

</mosaic_0001>

<llo_original>
// kernel: node_apply.1
$region0: #{node_apply.1}
  #allocation0 [shape = 'u32[]', space=smem, size = 0x4, offset = 0x4, fixed_abs, tag = 'smem constant byte address 0x4 - core index']
  #allocation1 [shape = 'u32[144,128]{1,0:T(1,128)}', space=vmem, size = 0x12000, scoped, tag = 'internal scratch']
  %s0 = inlined_call_operand.hbm [shape: f32[8,32], index: 0, kind: input, shape index: {}]
  %s1 = inlined_call_operand.hbm [shape: f32[32,128], index: 1, kind: input, shape index: {}]
  %s2 = inlined_call_operand.vmem [shape: f32[1,128], index: 2, kind: input, shape index: {}]
  %s3 = inlined_call_operand.hbm [shape: f32[8,128], index: 3, kind: output, shape index: {}]
  %s4 = sld [smem:[#allocation0]]
  $region30: #{node_apply.1} parent=0
    _
  %s6 = ssub.s32 1, %s4
  %s7 = scalar_select 0, %s6, %s4
  $region1: #{node_apply.1} parent=0
    #allocation2 [shape = 'u8[4096]{0}', space=vmem, size = 0x1000, scoped, tag = 'input window, operand 0, single buffered']
    #allocation3 [shape = 's32[1]{0}', space=sflag, size = 0x4, scoped, tag = 'scoped memory for node_apply.1']
    #allocation4 [shape = 's32[1]{0}', space=sflag, size = 0x4, scoped, tag = 'scoped memory for node_apply.1']
    #allocation5 [shape = 'u8[16384]{0}', space=vmem, size = 0x4000, scoped, tag = 'input window, operand 1, single buffered']
    #allocation6 [shape = 's32[1]{0}', space=sflag, size = 0x4, scoped, tag = 'scoped memory for node_apply.1']
    #allocation7 [shape = 'u8[4096]{0}', space=vmem, size = 0x1000, scoped, tag = 'output window, operand 0, single buffered']
    %8 = vsyncpa [#allocation3], 0
    %9 = vsyncpa [#allocation6], 0
    %10 = vsyncpa [#allocation4], 0
    // Predicated region
    $region2: #{node_apply.1} parent=1 // pred_check
      _
    $region3: #{node_apply.1} parent=1 // pred_check_branch
      %12 = sbr.rel (0) target = $region5
    $region4: #{node_apply.1} parent=1 // pred_region
      %s14 = ssub.s32 128, 128
      %15 = vsyncadd [#allocation3], %s14
      %s17 = sshll.u32 [#allocation2], 4
      %s18 = int_to_ptr.vmem [resolvable:$true] %s17
      %20 = dma.hbm_to_vmem [thread:$0]  %s0, 128, %s18, [#allocation3]
    $region5: #{node_apply.1} parent=1 // pred_fallthru
      _
    // Predicated region
    $region6: #{node_apply.1} parent=1 // pred_check
      _
    $region7: #{node_apply.1} parent=1 // pred_check_branch
      %22 = sbr.rel (0) target = $region9
    $region8: #{node_apply.1} parent=1 // pred_region
      %s24 = ssub.s32 512, 512
      %25 = vsyncadd [#allocation6], %s24
      %s26 = sshll.u32 [#allocation5], 4
      %s27 = int_to_ptr.vmem [resolvable:$true] %s26
      %32 = dma.hbm_to_vmem [thread:$0]  %s1, 512, %s27, [#allocation6], 128, 128, 8
    $region9: #{node_apply.1} parent=1 // pred_fallthru
      _
    // Predicated region
    $region10: #{node_apply.1} parent=1 // pred_check
      _
    $region11: #{node_apply.1} parent=1 // pred_check_branch
      %34 = sbr.rel (0) target = $region13
    $region12: #{node_apply.1} parent=1 // pred_region
      _
    $region13: #{node_apply.1} parent=1 // pred_fallthru
      _
    // Predicated region
    $region14: #{node_apply.1} parent=1 // pred_check
      _
    $region15: #{node_apply.1} parent=1 // pred_check_branch
      %36 = sbr.rel (0) target = $region17
    $region16: #{node_apply.1} parent=1 // pred_region
      %37 = dma.done [#allocation3], 128
    $region17: #{node_apply.1} parent=1 // pred_fallthru
      _
    // Predicated region
    $region18: #{node_apply.1} parent=1 // pred_check
      _
    $region19: #{node_apply.1} parent=1 // pred_check_branch
      %39 = sbr.rel (0) target = $region21
    $region20: #{node_apply.1} parent=1 // pred_region
      %40 = dma.done [#allocation6], 512
    $region21: #{node_apply.1} parent=1 // pred_fallthru
      _
    %v41 = vld [vmem:[#allocation2] sm:$0xff]
    %v42 = vld [vmem:[#allocation5] sm:$0xff]
    %v43 = vld [vmem:[#allocation5 + $0x8] sm:$0xff]
    %v44 = vld [vmem:[#allocation5 + $0x10] sm:$0xff]
    %v45 = vld [vmem:[#allocation5 + $0x18] sm:$0xff]
    %v46 = vld [vmem:[%s2] sm:$0x1]
    %v48 = vlaneseq
    %v49 = vshrl.u32 %v48, 7
    %v50 = vsub.s32 0, %v49
    %v51 = vrot.slane %v46, %v50
    %vm53 = vcmask 261120
    %v55 = vsel %vm53, %v41, 0
    %57 = vmatprep.subr.mxu0 0.0
    %58 = vmatpush1.msra.mxu0 %v42
    %59 = vmatprep.subr.mxu0 0.0
    %60 = vmatpush1.msra.mxu0 %v43
    %61 = vmatprep.subr.mxu0 0.0
    %62 = vmatpush1.msra.mxu0 %v44
    %63 = vmatprep.subr.mxu0 0.0
    %64 = vmatpush1.msra.mxu0 %v45
    %65 = vmatprep.subr.mxu0 0.0
    %66 = vmatpush1.msra.mxu0 0.0
    %67 = vmatprep.subr.mxu0 0.0
    %68 = vmatpush1.msra.mxu0 0.0
    %69 = vmatprep.subr.mxu0 0.0
    %70 = vmatpush1.msra.mxu0 0.0
    %71 = vmatprep.subr.mxu0 0.0
    %72 = vmatpush1.msra.mxu0 0.0
    %73 = vmatprep.subr.mxu0 0.0
    %74 = vmatpush1.msra.mxu0 0.0
    %75 = vmatprep.subr.mxu0 0.0
    %76 = vmatpush1.msra.mxu0 0.0
    %77 = vmatprep.subr.mxu0 0.0
    %78 = vmatpush1.msra.mxu0 0.0
    %79 = vmatprep.subr.mxu0 0.0
    %80 = vmatpush1.msra.mxu0 0.0
    %81 = vmatprep.subr.mxu0 0.0
    %82 = vmatpush1.msra.mxu0 0.0
    %83 = vmatprep.subr.mxu0 0.0
    %84 = vmatpush1.msra.mxu0 0.0
    %85 = vmatprep.subr.mxu0 0.0
    %86 = vmatpush1.msra.mxu0 0.0
    %87 = vmatprep.subr.mxu0 0.0
    %88 = vmatpush1.msra.mxu0 0.0
    %89 = vmatprep.subr.mxu0 0.0
    %90 = vmatpush1.msra.mxu0 0.0
    %91 = vmatprep.subr.mxu0 0.0
    %92 = vmatpush1.msra.mxu0 0.0
    %93 = vmatprep.subr.mxu0 0.0
    %94 = vmatpush1.msra.mxu0 0.0
    %95 = vmatprep.subr.mxu0 0.0
    %96 = vmatpush1.msra.mxu0 0.0
    %97 = vmatprep.subr.mxu0 0.0
    %98 = vmatpush1.msra.mxu0 0.0
    %99 = vmatprep.subr.mxu0 0.0
    %100 = vmatpush1.msra.mxu0 0.0
    %101 = vmatprep.subr.mxu0 0.0
    %102 = vmatpush1.msra.mxu0 0.0
    %103 = vmatprep.subr.mxu0 0.0
    %104 = vmatpush1.msra.mxu0 0.0
    %105 = vmatprep.subr.mxu0 0.0
    %106 = vmatpush1.msra.mxu0 0.0
    %107 = vmatprep.subr.mxu0 0.0
    %108 = vmatpush1.msra.mxu0 0.0
    %109 = vmatprep.subr.mxu0 0.0
    %110 = vmatpush1.msra.mxu0 0.0
    %111 = vmatprep.subr.mxu0 0.0
    %112 = vmatpush1.msra.mxu0 0.0
    %113 = vmatprep.subr.mxu0 0.0
    %114 = vmatpush1.msra.mxu0 0.0
    %115 = vmatprep.subr.mxu0 0.0
    %116 = vmatpush1.msra.mxu0 0.0
    %117 = vmatprep.subr.mxu0 0.0
    %118 = vmatpush1.msra.mxu0 0.0
    %119 = vmatprep.subr.mxu0 0.0
    %120 = vmatpush1.msra.mxu0 0.0
    %121 = vmatprep.mubr.f32.mxu0 0.0
    %122 = vmatmul.mubr.f32.gmra.mrb[0].mxu0 %v55
    %v123 = vpop.f32.mrb[0].mxu0
    %v124 = vadd.f32 %v51, %v123
    %v125 = vpop.f32.mrb[0].mxu0
    %126 = vdwg.mxu0
    %v127 = vmax.f32 %v124, 0.0
    %128 = vst [vmem:[#allocation7] sm:$0xff] %v127
    // Predicated region
    $region22: #{node_apply.1} parent=1 // pred_check
      _
    $region23: #{node_apply.1} parent=1 // pred_check_branch
      %130 = sbr.rel (0) target = $region25
    $region24: #{node_apply.1} parent=1 // pred_region
      %s132 = ssub.s32 128, 128
      %133 = vsyncadd [#allocation4], %s132
      %s135 = sshll.u32 [#allocation7], 4
      %s136 = int_to_ptr.vmem [resolvable:$true] %s135
      %138 = dma.vmem_to_hbm [thread:$0]  %s136, 128, %s3, [#allocation4]
    $region25: #{node_apply.1} parent=1 // pred_fallthru
      _
    // Predicated region
    $region26: #{node_apply.1} parent=1 // pred_check
      _
    $region27: #{node_apply.1} parent=1 // pred_check_branch
      %140 = sbr.rel (0) target = $region29
    $region28: #{node_apply.1} parent=1 // pred_region
      %141 = dma.done [#allocation4], 128
    $region29: #{node_apply.1} parent=1 // pred_fallthru
      _
    %142 = vsyncpa [#allocation3], 1
    %143 = vsyncpa [#allocation6], 1
    %144 = vsyncpa [#allocation4], 1

</llo_original>
